<compile_context>
chip_gen: v6e
topology: v6e:2x2x1
jax: 0.10.0
libtpu: 0.0.40
codegen_flags: <defaults>
</compile_context>

<pallas_src>
import functools

import jax
import jax.numpy as jnp
from jax.experimental import pallas as pl
from jax.experimental.pallas import tpu as pltpu


def _round_up(x: int, m: int) -> int:
    return ((x + m - 1) // m) * m


def _is_multi_tensorcore() -> bool:
    # v7x packs 2 TensorCores per chip; v5e/v6e have 1.  Keep the >=2-tile split
    # only where it feeds a second core (on 1-TC parts it just adds grid overhead).
    try:
        kind = jax.devices()[0].device_kind.lower()
    except Exception:
        return False
    return any(tag in kind for tag in ("v7", "tpu7", "7x"))


@functools.lru_cache(maxsize=None)
def _single_buffer_supported() -> bool:
    """Probe once whether this JAX/Mosaic build accepts pipeline_mode=pl.Buffered(1)
    (single-buffered constant operands).  Falls back to default double-buffering."""
    try:
        def _copy(x_ref, o_ref):
            o_ref[...] = x_ref[...]

        probe = pl.pallas_call(
            _copy,
            out_shape=jax.ShapeDtypeStruct((8, 128), jnp.float32),
            grid=(1,),
            in_specs=[pl.BlockSpec((8, 128), lambda i: (0, 0),
                                   pipeline_mode=pl.Buffered(1))],
            out_specs=pl.BlockSpec((8, 128), lambda i: (0, 0)),
        )
        jax.jit(probe).lower(jnp.zeros((8, 128), jnp.float32)).compile()
        return True
    except Exception:
        return False


def _choose_tm(M: int, pack: int, cap: int, multi_tc: bool) -> int:
    """Pick an M tile: prefer an exact divisor of M (no tail pad -> no post-kernel
    output copy), pack-aligned, bounded by `cap`, and >=2 grid steps on 2-TC chips."""
    cap = max(pack, (cap // pack) * pack)
    for t in range(min(cap, (M // pack) * pack), pack - 1, -pack):
        if M % t == 0:
            if multi_tc and (M // t) < 2 and t > pack:
                continue  # keep looking for a >=2-step grid for the second TC
            return t
    # No aligned divisor: bounded tile with zero-padded (bias-only) tail rows.
    return min(cap, max(pack, _round_up(pl.cdiv(M, 2 if multi_tc else 1), pack)))


def _patch_embed_kernel(x_ref, w_ref, b_ref, o_ref):
    # x_ref: (TM, K_pad) patch rows; w_ref: (K_pad, D_pad); b_ref: (1, D_pad) f32;
    # o_ref: (TM, D_pad).  One lane-dense MXU matmul per grid step, f32 accumulate.
    acc = jnp.dot(x_ref[...], w_ref[...], preferred_element_type=jnp.float32)
    o_ref[...] = (acc + b_ref[...]).astype(o_ref.dtype)


def prepare_patch_embed_params(weight, bias, *, compute_dtype=jnp.bfloat16):
    """Hoisted weight/bias prep (do once at init, not per call).
    weight: (D, C, P, P); bias: (D,).  Returns (w2d (K_pad, D_pad), b2d (1, D_pad), D)."""
    D = weight.shape[0]
    K = weight.shape[1] * weight.shape[2] * weight.shape[3]
    K_pad = _round_up(K, 128)
    D_pad = _round_up(D, 128)
    w2d = weight.reshape(D, K).T.astype(compute_dtype)      # (K, D), conv (C,ph,pw) order
    if (K_pad, D_pad) != (K, D):
        w2d = jnp.pad(w2d, ((0, K_pad - K), (0, D_pad - D)))
    b2d = bias.reshape(1, D).astype(jnp.float32)             # bias added in f32
    if D_pad != D:
        b2d = jnp.pad(b2d, ((0, 0), (0, D_pad - D)))
    return w2d, b2d, D


def patch_embed_forward(x, w2d, b2d, d_model, patch_size, *,
                        compute_dtype=jnp.bfloat16, out_dtype=None, tm_cap=None):
    """x: (N, C, H, W); w2d/b2d from prepare_patch_embed_params.  Returns (N, L, D)."""
    N, C, H, W = x.shape
    P = patch_size
    D = d_model
    Hp, Wp = H // P, W // P          # matches Conv2d(stride=P, padding=0): drops edges
    L = Hp * Wp
    K = C * P * P
    M = N * L
    K_pad, D_pad = w2d.shape
    out_dtype = out_dtype or x.dtype

    itemsize = jnp.dtype(compute_dtype).itemsize
    pack = 16 if itemsize < 4 else 8               # bf16 packs (16,128) per vreg
    if tm_cap is None:
        tm_cap = 2048 if itemsize < 4 else 1024    # f32 capped for v7x 64 MiB VMEM

    # --- im2col: (N,C,H,W) -> (M, K) rows of flattened (C, ph, pw) patches.
    # allow_input_fusion below lets XLA fuse this producer chain into the kernel's
    # input DMA instead of materializing an HBM->HBM im2col copy.
    patches = (
        x.reshape(N, C, Hp, P, Wp, P)
        .transpose(0, 2, 4, 1, 3, 5)               # (N, Hp, Wp, C, P, P)
        .reshape(M, K)
        .astype(compute_dtype)
    )
    if K_pad != K:
        patches = jnp.pad(patches, ((0, 0), (0, K_pad - K)))

    multi_tc = _is_multi_tensorcore()
    TM = _choose_tm(M, pack, tm_cap, multi_tc)
    grid_m = pl.cdiv(M, TM)
    M_pad = grid_m * TM
    if M_pad != M:
        # zero tail rows -> bias-only garbage rows, sliced off below.
        patches = jnp.pad(patches, ((0, M_pad - M), (0, 0)))

    # Single-buffer the grid-constant weight/bias operands when supported
    # (halves their VMEM footprint; matters most under v7x's 64 MiB).
    const_mode = {}
    if _single_buffer_supported():
        const_mode = dict(pipeline_mode=pl.Buffered(1))

    out_bytes = jnp.dtype(out_dtype).itemsize
    cost = pl.CostEstimate(
        flops=2 * M_pad * K_pad * D_pad,
        transcendentals=0,
        bytes_accessed=(M_pad * K_pad * itemsize + K_pad * D_pad * itemsize
                        + D_pad * 4 + M_pad * D_pad * out_bytes),
    )

    out = pl.pallas_call(
        _patch_embed_kernel,
        out_shape=jax.ShapeDtypeStruct((M_pad, D_pad), out_dtype),
        grid_spec=pltpu.PrefetchScalarGridSpec(
            num_scalar_prefetch=0,
            grid=(grid_m,),
            in_specs=[
                pl.BlockSpec((TM, K_pad), lambda i: (i, 0)),
                pl.BlockSpec((K_pad, D_pad), lambda i: (0, 0), **const_mode),
                pl.BlockSpec((1, D_pad), lambda i: (0, 0), **const_mode),
            ],
            out_specs=pl.BlockSpec((TM, D_pad), lambda i: (i, 0)),
        ),
        compiler_params=pltpu.CompilerParams(
            dimension_semantics=("parallel",),
            # Let XLA fuse the im2col reshape/transpose/pad into the patch operand DMA.
            allow_input_fusion=[True, False, False],
            # Fits v7x's 64 MiB physical VMEM with pipeline headroom; plenty on v5e/v6e.
            vmem_limit_bytes=48 * 1024 * 1024,
        ),
        cost_estimate=cost,
    )(patches, w2d, b2d)

    # TODO(synk): if xprof shows the im2col materializing in HBM despite
    # allow_input_fusion, move the gather in-kernel (memory_space=pl.ANY +
    # pltpu.make_async_copy of (P, W) slabs per (n, c, hp)).
    if M_pad == M and D_pad == D:
        return out.reshape(N, L, D)          # no-op path: no post-kernel HBM->HBM copy
    return out[:M, :D].reshape(N, L, D)


class PatchEmbeddingConvPallas:
    """Pallas port of PatchEmbeddingConv.forward with weight/bias prep hoisted to init."""

    def __init__(self, weight, bias, patch_size, *, compute_dtype=jnp.bfloat16,
                 out_dtype=None, tm_cap=None):
        self.patch_size = patch_size
        self.compute_dtype = compute_dtype
        self.out_dtype = out_dtype
        self.tm_cap = tm_cap
        self.w2d, self.b2d, self.d_model = prepare_patch_embed_params(
            weight, bias, compute_dtype=compute_dtype)

    def __call__(self, x):
        return patch_embed_forward(
            x, self.w2d, self.b2d, self.d_model, self.patch_size,
            compute_dtype=self.compute_dtype, out_dtype=self.out_dtype,
            tm_cap=self.tm_cap)


def patch_embedding_conv(x, weight, bias, patch_size, *, compute_dtype=jnp.bfloat16, **kw):
    """One-shot functional form (prep + forward)."""
    w2d, b2d, D = prepare_patch_embed_params(weight, bias, compute_dtype=compute_dtype)
    return patch_embed_forward(x, w2d, b2d, D, patch_size, compute_dtype=compute_dtype, **kw)


if __name__ == "__main__":
    # Small, deterministic configuration consistent with the module:
    # input_channels=3, patch_size=8, d_model=128, images 2 x 3 x 32 x 32.
    N, C, H, W = 2, 3, 32, 32
    P = 8
    D = 128

    key = jax.random.PRNGKey(0)
    kx, kw, kb = jax.random.split(key, 3)
    x = jax.random.normal(kx, (N, C, H, W), dtype=jnp.float32)
    weight = jax.random.normal(kw, (D, C, P, P), dtype=jnp.float32) * 0.02
    bias = jax.random.normal(kb, (D,), dtype=jnp.float32) * 0.02

    # Plain-JAX reference of the same math (per-patch linear projection).
    Hp, Wp = H // P, W // P
    ref_patches = (
        x.reshape(N, C, Hp, P, Wp, P)
        .transpose(0, 2, 4, 1, 3, 5)
        .reshape(N, Hp * Wp, C * P * P)
    )
    ref = jnp.einsum("nlk,dk->nld", ref_patches, weight.reshape(D, -1)) + bias

    # Default path: bf16 compute, f32 accumulate (the big lever on every TPU gen).
    embed_bf16 = PatchEmbeddingConvPallas(weight, bias, P)    # compute_dtype=bf16 default
    fwd_bf16 = jax.jit(lambda xx: embed_bf16(xx))
    out_bf16 = jax.block_until_ready(fwd_bf16(x))
    assert out_bf16.shape == (N, Hp * Wp, D)
    assert jnp.allclose(out_bf16, ref, atol=3e-2, rtol=3e-2)

    # f32 compute path: bit-tight against the reference.
    embed_f32 = PatchEmbeddingConvPallas(weight, bias, P, compute_dtype=jnp.float32)
    fwd_f32 = jax.jit(lambda xx: embed_f32(xx))
    out_f32 = jax.block_until_ready(fwd_f32(x))
    assert out_f32.shape == (N, Hp * Wp, D)
    assert jnp.allclose(out_f32, ref, atol=1e-4, rtol=1e-4)

    print("KERNEL_OK")
</pallas_src>

<mosaic_0001>
module attributes {stable_mosaic.version = 11 : i64} {
  func.func @_patch_embed_kernel(%arg0: i32, %arg1: memref<32x256xbf16, #tpu.memory_space<vmem>>, %arg2: memref<256x128xbf16, #tpu.memory_space<vmem>>, %arg3: memref<1x128xf32, #tpu.memory_space<vmem>>, %arg4: memref<32x128xf32, #tpu.memory_space<vmem>>) attributes {dimension_semantics = [#tpu.dimension_semantics<parallel>], iteration_bounds = array<i64: 1>, scalar_prefetch = 0 : i64, scratch_operands = 0 : i64, tpu.core_type = #tpu.core_type<tc>, window_params = [{transform_indices = @transform_0, window_bounds = array<i64: 32, 256>}, {pipeline_mode = #tpu.pipeline_mode<synchronous>, transform_indices = @transform_1, window_bounds = array<i64: 256, 128>}, {pipeline_mode = #tpu.pipeline_mode<synchronous>, transform_indices = @transform_2, window_bounds = array<i64: 1, 128>}, {transform_indices = @transform_3, window_bounds = array<i64: 32, 128>}]} {
    %c0 = arith.constant 0 : index
    %c0_0 = arith.constant 0 : index
    %0 = vector.load %arg1[%c0, %c0_0] : memref<32x256xbf16, #tpu.memory_space<vmem>>, vector<32x256xbf16>
    %c0_1 = arith.constant 0 : index
    %c0_2 = arith.constant 0 : index
    %1 = vector.load %arg2[%c0_1, %c0_2] : memref<256x128xbf16, #tpu.memory_space<vmem>>, vector<256x128xbf16>
    %cst = arith.constant dense<0.000000e+00> : vector<32x128xf32>
    %2 = tpu.matmul %0, %1, %cst {dimension_numbers = #tpu.dot_dimension_numbers<[1], [0], [0], [1], [0, 0, 1, 1], [], []>} : vector<32x256xbf16>, vector<256x128xbf16>, vector<32x128xf32> -> vector<32x128xf32>
    %c0_3 = arith.constant 0 : index
    %c0_4 = arith.constant 0 : index
    %3 = vector.load %arg3[%c0_3, %c0_4] : memref<1x128xf32, #tpu.memory_space<vmem>>, vector<1x128xf32>
    %4 = vector.broadcast %3 : vector<1x128xf32> to vector<32x128xf32>
    %5 = arith.addf %2, %4 : vector<32x128xf32>
    %c0_5 = arith.constant 0 : index
    %c0_6 = arith.constant 0 : index
    %6 = vector.load %arg4[%c0_5, %c0_6] : memref<32x128xf32, #tpu.memory_space<vmem>>, vector<32x128xf32>
    tpu.vector_store %arg4[%c0_5, %c0_6], %5 {strides = array<i32>} : memref<32x128xf32, #tpu.memory_space<vmem>>, vector<32x128xf32>,
    return
  }
  func.func @transform_0(%arg0: i32) -> (i32, i32) {
    %c0_i32 = arith.constant 0 : i32
    %c0_i32_0 = arith.constant 0 : i32
    return %arg0, %c0_i32 : i32, i32
  }
  func.func @transform_1(%arg0: i32) -> (i32, i32) {
    %c0_i32 = arith.constant 0 : i32
    %c0_i32_0 = arith.constant 0 : i32
    %c0_i32_1 = arith.constant 0 : i32
    return %c0_i32, %c0_i32_0 : i32, i32
  }
  func.func @transform_2(%arg0: i32) -> (i32, i32) {
    %c0_i32 = arith.constant 0 : i32
    %c0_i32_0 = arith.constant 0 : i32
    %c0_i32_1 = arith.constant 0 : i32
    return %c0_i32, %c0_i32_0 : i32, i32
  }
  func.func @transform_3(%arg0: i32) -> (i32, i32) {
    %c0_i32 = arith.constant 0 : i32
    %c0_i32_0 = arith.constant 0 : i32
    return %arg0, %c0_i32 : i32, i32
  }
}

</mosaic_0001>

<llo_original>
// kernel: _lambda_.2
$region0: #{_lambda_.2}
  #allocation0 [shape = 'u32[]', space=smem, size = 0x4, offset = 0x4, fixed_abs, tag = 'smem constant byte address 0x4 - core index']
  #allocation1 [shape = 'u32[144,128]{1,0:T(1,128)}', space=vmem, size = 0x12000, scoped, tag = 'internal scratch']
  #allocation2 [shape = 'u32[2048]{0}', space=vmem, size = 0x2000, scoped, tag = 'scoped memory for _lambda_.2']
  #allocation3 [shape = 'u32[2048]{0}', space=vmem, size = 0x2000, scoped, tag = 'scoped memory for _lambda_.2']
  #allocation4 [shape = 'u32[2048]{0}', space=vmem, size = 0x2000, scoped, tag = 'scoped memory for _lambda_.2']
  #allocation5 [shape = 'u32[2048]{0}', space=vmem, size = 0x2000, scoped, tag = 'scoped memory for _lambda_.2']
  #allocation6 [shape = 'u32[2048]{0}', space=vmem, size = 0x2000, scoped, tag = 'scoped memory for _lambda_.2']
  %s0 = inlined_call_operand.vmem [shape: bf16[256,128], index: 0, kind: input, shape index: {}]
  %s1 = inlined_call_operand.vmem [shape: f32[1,128], index: 1, kind: input, shape index: {}]
  %s2 = inlined_call_operand.vmem [shape: bf16[32,192], index: 2, kind: input, shape index: {}]
  %s3 = inlined_call_operand.<no memory space> [shape: bf16[], index: 3, kind: input, shape index: {}]
  %s4 = inlined_call_operand.hbm [shape: f32[32,128], index: 4, kind: output, shape index: {}]
  %s5 = sld [smem:[#allocation0]]
  $region22: #{_lambda_.2} parent=0
    _
  %s7 = ssub.s32 1, %s5
  %s8 = scalar_select 0, %s7, %s5
  %v9 = vstv %s3
  %v10 = vunpack.i.l.bf16 %v9
  %v12 = vunpack.i.h.bf16 %v9
  $region1: #{_lambda_.2} parent=0
    #allocation7 [shape = 'u8[16384]{0}', space=vmem, size = 0x4000, scoped, tag = 'output window, operand 0, single buffered']
    #allocation8 [shape = 's32[1]{0}', space=sflag, size = 0x4, scoped, tag = 'scoped memory for _lambda_.2']
    #allocation9 [shape = 'u8[16384]{0}', space=vmem, size = 0x4000, dematerialized = true, scoped, tag = 'FusionAdapter Buffer %fusion.1 = bf16[32,256]{1,0:T(8,128)(2,1)} fusion(%param_2.1, %param_3), kind=kLoop, calls=%fused_computation.2.clone, metadata={op_name="jit(<lambda>)/jit(_pad)/pad" stack_frame_id=15}']
    %14 = vsyncpa [#allocation8], 0
    // Predicated region
    $region2: #{_lambda_.2} parent=1 // pred_check
      _
    $region3: #{_lambda_.2} parent=1 // pred_check_branch
      %16 = sbr.rel (0) target = $region5
    $region4: #{_lambda_.2} parent=1 // pred_region
      _
    $region5: #{_lambda_.2} parent=1 // pred_fallthru
      _
    // Predicated region
    $region6: #{_lambda_.2} parent=1 // pred_check
      _
    $region7: #{_lambda_.2} parent=1 // pred_check_branch
      %18 = sbr.rel (0) target = $region9
    $region8: #{_lambda_.2} parent=1 // pred_region
      _
    $region9: #{_lambda_.2} parent=1 // pred_fallthru
      _
    // Predicated region
    $region10: #{_lambda_.2} parent=1 // pred_check
      _
    $region11: #{_lambda_.2} parent=1 // pred_check_branch
      %20 = sbr.rel (0) target = $region13
    $region12: #{_lambda_.2} parent=1 // pred_region
      _
    $region13: #{_lambda_.2} parent=1 // pred_fallthru
      _
    %v21 = vld [vmem:[%s2] sm:$0xf]
    %v22 = vunpack.c.l.bf16 %v21
    %v23 = vunpack.c.h.bf16 %v21
    %v24 = vlaneseq
    %v25 = vand.u32 %v24, 127
    %vm27 = vcmp.lt.s32.totalorder %v25, 192
    %v28 = vsel %vm27, %v22, %v10
    %v29 = vpack.c.bf16 0.0, %v28
    %s31 = ssub.s32 16, 1
    %32 = vst [vmem:[#allocation9] sm:%s31] %v29
    %s33 = scalar_lea.vmem %s2, 4
    %s35 = sor.u32 255, 127
    %s36 = sand.u32 %s35, 85
    %s37 = sshrl.u32 %s36, 1
    %s38 = sor.u32 %s36, %s37
    %s39 = sand.u32 51, %s38
    %s40 = sshrl.u32 %s39, 2
    %s41 = sor.u32 %s39, %s40
    %s42 = sand.u32 15, %s41
    %v43 = vld [vmem:[%s33] sm:%s42]
    %v44 = vunpack.c.l.bf16 %v43
    %v45 = vunpack.c.h.bf16 %v43
    %v46 = vlaneseq
    %v47 = vand.u32 %v46, 127
    %v48 = vadd.s32 %v47, 128
    %vm49 = vcmp.lt.s32.totalorder %v48, 192
    %v50 = vsel %vm49, %v44, %v10
    %s51 = scalar_lea.vmem [#allocation9], 4
    %v52 = vpack.c.bf16 0.0, %v50
    %s54 = ssub.s32 16, 1
    %55 = vst [vmem:[%s51] sm:%s54] %v52
    %s56 = scalar_lea.vmem %s2, 8
    %v57 = vld [vmem:[%s56] sm:$0xf]
    %v58 = vunpack.c.l.bf16 %v57
    %v59 = vunpack.c.h.bf16 %v57
    %v60 = vlaneseq
    %v61 = vand.u32 %v60, 127
    %vm63 = vcmp.lt.s32.totalorder %v61, 192
    %v64 = vsel %vm63, %v58, %v10
    %s65 = scalar_lea.vmem [#allocation9], 8
    %v66 = vpack.c.bf16 0.0, %v64
    %s68 = ssub.s32 16, 1
    %69 = vst [vmem:[%s65] sm:%s68] %v66
    %s70 = scalar_lea.vmem %s2, 12
    %s72 = sor.u32 255, 127
    %s73 = sand.u32 %s72, 85
    %s74 = sshrl.u32 %s73, 1
    %s75 = sor.u32 %s73, %s74
    %s76 = sand.u32 51, %s75
    %s77 = sshrl.u32 %s76, 2
    %s78 = sor.u32 %s76, %s77
    %s79 = sand.u32 15, %s78
    %v80 = vld [vmem:[%s70] sm:%s79]
    %v81 = vunpack.c.l.bf16 %v80
    %v82 = vunpack.c.h.bf16 %v80
    %v83 = vlaneseq
    %v84 = vand.u32 %v83, 127
    %v85 = vadd.s32 %v84, 128
    %vm86 = vcmp.lt.s32.totalorder %v85, 192
    %v87 = vsel %vm86, %v81, %v10
    %s88 = scalar_lea.vmem [#allocation9], 12
    %v89 = vpack.c.bf16 0.0, %v87
    %s91 = ssub.s32 16, 1
    %92 = vst [vmem:[%s88] sm:%s91] %v89
    %s93 = scalar_lea.vmem %s2, 16
    %v94 = vld [vmem:[%s93] sm:$0xf]
    %v95 = vunpack.c.l.bf16 %v94
    %v96 = vunpack.c.h.bf16 %v94
    %v97 = vlaneseq
    %v98 = vand.u32 %v97, 127
    %vm100 = vcmp.lt.s32.totalorder %v98, 192
    %v101 = vsel %vm100, %v95, %v10
    %s102 = scalar_lea.vmem [#allocation9], 16
    %v103 = vpack.c.bf16 0.0, %v101
    %s105 = ssub.s32 16, 1
    %106 = vst [vmem:[%s102] sm:%s105] %v103
    %s107 = scalar_lea.vmem %s2, 20
    %s109 = sor.u32 255, 127
    %s110 = sand.u32 %s109, 85
    %s111 = sshrl.u32 %s110, 1
    %s112 = sor.u32 %s110, %s111
    %s113 = sand.u32 51, %s112
    %s114 = sshrl.u32 %s113, 2
    %s115 = sor.u32 %s113, %s114
    %s116 = sand.u32 15, %s115
    %v117 = vld [vmem:[%s107] sm:%s116]
    %v118 = vunpack.c.l.bf16 %v117
    %v119 = vunpack.c.h.bf16 %v117
    %v120 = vlaneseq
    %v121 = vand.u32 %v120, 127
    %v122 = vadd.s32 %v121, 128
    %vm123 = vcmp.lt.s32.totalorder %v122, 192
    %v124 = vsel %vm123, %v118, %v10
    %s125 = scalar_lea.vmem [#allocation9], 20
    %v126 = vpack.c.bf16 0.0, %v124
    %s128 = ssub.s32 16, 1
    %129 = vst [vmem:[%s125] sm:%s128] %v126
    %s130 = scalar_lea.vmem %s2, 24
    %v131 = vld [vmem:[%s130] sm:$0xf]
    %v132 = vunpack.c.l.bf16 %v131
    %v133 = vunpack.c.h.bf16 %v131
    %v134 = vlaneseq
    %v135 = vand.u32 %v134, 127
    %vm137 = vcmp.lt.s32.totalorder %v135, 192
    %v138 = vsel %vm137, %v132, %v10
    %s139 = scalar_lea.vmem [#allocation9], 24
    %v140 = vpack.c.bf16 0.0, %v138
    %s142 = ssub.s32 16, 1
    %143 = vst [vmem:[%s139] sm:%s142] %v140
    %s144 = scalar_lea.vmem %s2, 28
    %s146 = sor.u32 255, 127
    %s147 = sand.u32 %s146, 85
    %s148 = sshrl.u32 %s147, 1
    %s149 = sor.u32 %s147, %s148
    %s150 = sand.u32 51, %s149
    %s151 = sshrl.u32 %s150, 2
    %s152 = sor.u32 %s150, %s151
    %s153 = sand.u32 15, %s152
    %v154 = vld [vmem:[%s144] sm:%s153]
    %v155 = vunpack.c.l.bf16 %v154
    %v156 = vunpack.c.h.bf16 %v154
    %v157 = vlaneseq
    %v158 = vand.u32 %v157, 127
    %v159 = vadd.s32 %v158, 128
    %vm160 = vcmp.lt.s32.totalorder %v159, 192
    %v161 = vsel %vm160, %v155, %v10
    %s162 = scalar_lea.vmem [#allocation9], 28
    %v163 = vpack.c.bf16 0.0, %v161
    %s165 = ssub.s32 16, 1
    %166 = vst [vmem:[%s162] sm:%s165] %v163
    %v168 = vld [vmem:[#allocation9] sm:$0xff]
    %v169 = vld [vmem:[#allocation9 + $0x8] sm:$0xff]
    %v170 = vld [vmem:[#allocation9 + $0x10] sm:$0xff]
    %v171 = vld [vmem:[#allocation9 + $0x18] sm:$0xff]
    %v172 = vld [vmem:[%s0] sm:$0xf]
    %v173 = vld [vmem:[%s0 + $0x4] sm:$0xf]
    %v174 = vld [vmem:[%s0 + $0x8] sm:$0xf]
    %v175 = vld [vmem:[%s0 + $0xc] sm:$0xf]
    %v176 = vld [vmem:[%s0 + $0x10] sm:$0xf]
    %v177 = vld [vmem:[%s0 + $0x14] sm:$0xf]
    %v178 = vld [vmem:[%s0 + $0x18] sm:$0xf]
    %v179 = vld [vmem:[%s0 + $0x1c] sm:$0xf]
    %v180 = vld [vmem:[%s0 + $0x20] sm:$0xf]
    %v181 = vld [vmem:[%s0 + $0x24] sm:$0xf]
    %v182 = vld [vmem:[%s0 + $0x28] sm:$0xf]
    %v183 = vld [vmem:[%s0 + $0x2c] sm:$0xf]
    %v184 = vld [vmem:[%s0 + $0x30] sm:$0xf]
    %v185 = vld [vmem:[%s0 + $0x34] sm:$0xf]
    %v186 = vld [vmem:[%s0 + $0x38] sm:$0xf]
    %v187 = vld [vmem:[%s0 + $0x3c] sm:$0xf]
    %v188 = vld [vmem:[%s0 + $0x40] sm:$0xf]
    %v189 = vld [vmem:[%s0 + $0x44] sm:$0xf]
    %v190 = vld [vmem:[%s0 + $0x48] sm:$0xf]
    %v191 = vld [vmem:[%s0 + $0x4c] sm:$0xf]
    %v192 = vld [vmem:[%s0 + $0x50] sm:$0xf]
    %v193 = vld [vmem:[%s0 + $0x54] sm:$0xf]
    %v194 = vld [vmem:[%s0 + $0x58] sm:$0xf]
    %v195 = vld [vmem:[%s0 + $0x5c] sm:$0xf]
    %v196 = vld [vmem:[%s0 + $0x60] sm:$0xf]
    %v197 = vld [vmem:[%s0 + $0x64] sm:$0xf]
    %v198 = vld [vmem:[%s0 + $0x68] sm:$0xf]
    %v199 = vld [vmem:[%s0 + $0x6c] sm:$0xf]
    %v200 = vld [vmem:[%s0 + $0x70] sm:$0xf]
    %v201 = vld [vmem:[%s0 + $0x74] sm:$0xf]
    %v202 = vld [vmem:[%s0 + $0x78] sm:$0xf]
    %v203 = vld [vmem:[%s0 + $0x7c] sm:$0xf]
    %v204 = vld [vmem:[%s1] sm:$0x1]
    %v206 = vlaneseq
    %v207 = vshrl.u32 %v206, 7
    %v208 = vsub.s32 0, %v207
    %v209 = vrot.slane %v204, %v208
    %v215 = vunpack.c.l.b16 %v168
    %v216 = vunpack.c.h.b16 %v168
    %v217 = vunpack.c.l.b16 %v169
    %v218 = vunpack.c.h.b16 %v169
    %v219 = vunpack.c.l.b16 %v170
    %v220 = vunpack.c.h.b16 %v170
    %v221 = vunpack.c.l.b16 %v171
    %v222 = vunpack.c.h.b16 %v171
    %v223 = vpack.c.b16 %v217, %v215
    %v224 = vpack.c.b16 %v218, %v216
    %v225 = vpack.c.b16 %v221, %v219
    %v226 = vpack.c.b16 %v222, %v220
    %v263 = vunpack.c.l.b16 %v172
    %v264 = vunpack.c.l.b16 %v173
    %v265 = vunpack.c.l.b16 %v174
    %v266 = vunpack.c.l.b16 %v175
    %v267 = vunpack.c.l.b16 %v176
    %v268 = vunpack.c.l.b16 %v177
    %v269 = vunpack.c.l.b16 %v178
    %v270 = vunpack.c.l.b16 %v179
    %v271 = vunpack.c.l.b16 %v180
    %v272 = vunpack.c.l.b16 %v181
    %v273 = vunpack.c.l.b16 %v182
    %v274 = vunpack.c.l.b16 %v183
    %v275 = vunpack.c.l.b16 %v184
    %v276 = vunpack.c.l.b16 %v185
    %v277 = vunpack.c.l.b16 %v186
    %v278 = vunpack.c.l.b16 %v187
    %v279 = vunpack.c.l.b16 %v188
    %v280 = vunpack.c.l.b16 %v189
    %v281 = vunpack.c.l.b16 %v190
    %v282 = vunpack.c.l.b16 %v191
    %v283 = vunpack.c.l.b16 %v192
    %v284 = vunpack.c.l.b16 %v193
    %v285 = vunpack.c.l.b16 %v194
    %v286 = vunpack.c.l.b16 %v195
    %v287 = vunpack.c.l.b16 %v196
    %v288 = vunpack.c.l.b16 %v197
    %v289 = vunpack.c.l.b16 %v198
    %v290 = vunpack.c.l.b16 %v199
    %v291 = vunpack.c.l.b16 %v200
    %v292 = vunpack.c.l.b16 %v201
    %v293 = vunpack.c.l.b16 %v202
    %v294 = vunpack.c.l.b16 %v203
    %v295 = vpack.c.b16 %v264, %v263
    %v296 = vpack.c.b16 %v266, %v265
    %v297 = vpack.c.b16 %v268, %v267
    %v298 = vpack.c.b16 %v270, %v269
    %v299 = vpack.c.b16 %v272, %v271
    %v300 = vpack.c.b16 %v274, %v273
    %v301 = vpack.c.b16 %v276, %v275
    %v302 = vpack.c.b16 %v278, %v277
    %v303 = vpack.c.b16 %v280, %v279
    %v304 = vpack.c.b16 %v282, %v281
    %v305 = vpack.c.b16 %v284, %v283
    %v306 = vpack.c.b16 %v286, %v285
    %v307 = vpack.c.b16 %v288, %v287
    %v308 = vpack.c.b16 %v290, %v289
    %v309 = vpack.c.b16 %v292, %v291
    %v310 = vpack.c.b16 %v294, %v293
    %327 = vmatprep.subr.bf16.mxu0 0
    %328 = vmatpush1.bf16.msra.mxu0 %v302
    %329 = vmatprep.subr.bf16.mxu0 0
    %330 = vmatpush1.bf16.msra.mxu0 %v301
    %331 = vmatprep.subr.bf16.mxu0 0
    %332 = vmatpush1.bf16.msra.mxu0 %v300
    %333 = vmatprep.subr.bf16.mxu0 0
    %334 = vmatpush1.bf16.msra.mxu0 %v299
    %335 = vmatprep.subr.bf16.mxu0 0
    %336 = vmatpush1.bf16.msra.mxu0 %v298
    %337 = vmatprep.subr.bf16.mxu0 0
    %338 = vmatpush1.bf16.msra.mxu0 %v297
    %339 = vmatprep.subr.bf16.mxu0 0
    %340 = vmatpush1.bf16.msra.mxu0 %v296
    %341 = vmatprep.subr.bf16.mxu0 0
    %342 = vmatpush1.bf16.msra.mxu0 %v295
    %343 = vmatprep.subr.bf16.mxu0 0
    %344 = vmatpush2.bf16.msra.mxu0 %v310
    %345 = vmatprep.subr.bf16.mxu0 0
    %346 = vmatpush2.bf16.msra.mxu0 %v309
    %347 = vmatprep.subr.bf16.mxu0 0
    %348 = vmatpush2.bf16.msra.mxu0 %v308
    %349 = vmatprep.subr.bf16.mxu0 0
    %350 = vmatpush2.bf16.msra.mxu0 %v307
    %351 = vmatprep.subr.bf16.mxu0 0
    %352 = vmatpush2.bf16.msra.mxu0 %v306
    %353 = vmatprep.subr.bf16.mxu0 0
    %354 = vmatpush2.bf16.msra.mxu0 %v305
    %355 = vmatprep.subr.bf16.mxu0 0
    %356 = vmatpush2.bf16.msra.mxu0 %v304
    %357 = vmatprep.subr.bf16.mxu0 0
    %358 = vmatpush2.bf16.msra.mxu0 %v303
    %359 = vmatprep.mubr.bf16.mxu0 %v224
    %360 = vmatmul.mubr.bf16.gmra.mxu0 %v223
    %v361 = vpop.f32.mrf.mxu0
    %v362 = vadd.f32 %v209, %v361
    %v363 = vpop.f32.mrf.mxu0
    %v364 = vpop.f32.mrf.mxu0
    %v365 = vadd.f32 %v209, %v364
    %v366 = vpop.f32.mrf.mxu0
    %367 = vmatprep.mubr.bf16.mxu0 %v226
    %368 = vmatmul.mubr.bf16.gmra.mxu0 %v225
    %v369 = vpop.f32.mrf.mxu0
    %v370 = vadd.f32 %v209, %v369
    %v371 = vpop.f32.mrf.mxu0
    %v372 = vpop.f32.mrf.mxu0
    %v373 = vadd.f32 %v209, %v372
    %v374 = vpop.f32.mrf.mxu0
    %375 = vdwg.mxu0
    %376 = vst [vmem:[#allocation7] sm:$0xff] %v362
    %377 = vst [vmem:[#allocation7 + $0x8] sm:$0xff] %v365
    %378 = vst [vmem:[#allocation7 + $0x10] sm:$0xff] %v370
    %379 = vst [vmem:[#allocation7 + $0x18] sm:$0xff] %v373
    // Predicated region
    $region14: #{_lambda_.2} parent=1 // pred_check
      _
    $region15: #{_lambda_.2} parent=1 // pred_check_branch
      %381 = sbr.rel (0) target = $region17
    $region16: #{_lambda_.2} parent=1 // pred_region
      %s383 = ssub.s32 512, 512
      %384 = vsyncadd [#allocation8], %s383
      %s385 = sshll.u32 [#allocation7], 4
      %s386 = int_to_ptr.vmem [resolvable:$true] %s385
      %391 = dma.vmem_to_hbm [thread:$0]  %s386, 512, %s4, [#allocation8], 128, 128, 8
    $region17: #{_lambda_.2} parent=1 // pred_fallthru
      _
    // Predicated region
    $region18: #{_lambda_.2} parent=1 // pred_check
      _
    $region19: #{_lambda_.2} parent=1 // pred_check_branch
      %393 = sbr.rel (0) target = $region21
    $region20: #{_lambda_.2} parent=1 // pred_region
      %394 = dma.done [#allocation8], 512
    $region21: #{_lambda_.2} parent=1 // pred_fallthru
      _
    %395 = vsyncpa [#allocation8], 1

</llo_original>
